<compile_context>
chip_gen: v5e
topology: v5e:2x2
jax: 0.10.0
libtpu: 0.0.40
codegen_flags: <defaults>
</compile_context>

<pallas_src>
import functools

import jax
import jax.numpy as jnp
from jax import lax
from jax.experimental import pallas as pl
from jax.experimental.pallas import tpu as pltpu


def _style_mod_kernel(lat_ref, wys_ref, wyb_ref, bys_ref, byb_ref, x_ref, o_ref,
                      *, wscale: float, b_mul: float, use_mxu: bool):
    n = pl.program_id(0)

    # Per-batch latent row, kept 2D: (1, D).
    lat = lat_ref[pl.ds(n, 1), :].astype(jnp.float32)

    wys = wys_ref[...].astype(jnp.float32)                       # (Cb, D)
    wyb = wyb_ref[...].astype(jnp.float32)                       # (Cb, D)

    if use_mxu:
        # Style linear on the otherwise-idle MXU: (Cb, D) x (1, D) -> (Cb, 1),
        # contracting on D (no explicit transpose needed).
        dn = (((1,), (1,)), ((), ()))
        ys = lax.dot_general(wys, lat, dn, preferred_element_type=jnp.float32)
        yb = lax.dot_general(wyb, lat, dn, preferred_element_type=jnp.float32)
    else:
        # Tiny Cb*D: a VPU multiply + cross-lane sum is all that's needed.
        ys = jnp.sum(wys * lat, axis=1, keepdims=True)
        yb = jnp.sum(wyb * lat, axis=1, keepdims=True)

    ys = ys * wscale + bys_ref[...].astype(jnp.float32) * b_mul  # (Cb, 1)
    yb = yb * wscale + byb_ref[...].astype(jnp.float32) * b_mul  # (Cb, 1)

    # Modulation: broadcast the (Cb, 1) style columns over the dense HW lane axis.
    if o_ref.dtype == jnp.float32:
        o_ref[...] = x_ref[...].astype(jnp.float32) * (ys + 1.0) + yb
    else:
        # bf16/fp16 activations: cast the per-channel style down once and do the
        # FMA in the native dtype (halves VPU op count / vreg pressure).
        scale = (ys + 1.0).astype(o_ref.dtype)
        shift = yb.astype(o_ref.dtype)
        o_ref[...] = x_ref[...] * scale + shift


def _choose_blocking(N: int, C: int, HW: int, itemsize: int, target_bytes: int):
    """Pick (mode, c_blk, hw_blk).

    mode == "hw": block over HW (full C rows), hw_blk a multiple of 128 or full HW.
    mode == "c" : block over channels at full HW (contiguous full-length rows).
    Grids use pl.cdiv, so blocks never need to divide the extents exactly.
    """
    sub = max(8, 32 // itemsize)            # sublane multiple for this dtype
    full_bytes = C * HW * itemsize

    if full_bytes <= target_bytes:
        # Whole (C, HW) slab per batch element fits comfortably.
        if N == 1:
            # Keep both v7x TensorCores busy: force >= 2 inner grid steps.
            if HW % 256 == 0:
                return "hw", C, HW // 2
            if C % (2 * sub) == 0:
                return "c", C // 2, HW
        return "hw", C, HW

    # Slab too big: prefer blocking over channels at full HW (longer HBM bursts,
    # lane-dense stores, per-block weight working set).
    row_bytes = HW * itemsize
    c_blk = (target_bytes // row_bytes) // sub * sub
    if c_blk >= sub:
        return "c", int(min(c_blk, C)), HW

    # Individual rows are huge: block HW in multiples of 128 instead.
    hw_blk = max((target_bytes // (C * itemsize)) // 128 * 128, 128)
    return "hw", C, int(min(hw_blk, HW))


def style_mod(x: jax.Array, latent: jax.Array, weight: jax.Array, bias: jax.Array,
              *, wscale: float, b_mul: float,
              target_block_bytes: int = 4 * 1024 * 1024) -> jax.Array:
    """Pallas TPU implementation of StyleMod.forward.

    x: (N, C, H, W); latent: (N, D); weight: (2C, D); bias: (2C,).
    """
    N, C, H, W = x.shape
    D = latent.shape[-1]
    assert latent.shape == (N, D)
    assert weight.shape == (2 * C, D)
    assert bias.shape == (2 * C,)

    HW = H * W
    x3 = x.reshape(N, C, HW)          # free reshape: H, W are trailing contiguous dims

    # style.view(N, 2, C)[:, 0] uses weight/bias rows [0, C); [:, 1] uses rows [C, 2C).
    w_ys = weight[:C]                 # (C, D)
    w_yb = weight[C:]                 # (C, D)
    b_ys = bias[:C].reshape(C, 1)     # (C, 1)
    b_yb = bias[C:].reshape(C, 1)     # (C, 1)

    itemsize = x.dtype.itemsize
    mode, c_blk, hw_blk = _choose_blocking(N, C, HW, itemsize, target_block_bytes)

    if mode == "c":
        n_inner = pl.cdiv(C, c_blk)
        x_index = lambda n, j: (n, j, 0)
        w_index = lambda n, j: (j, 0)
    else:
        n_inner = pl.cdiv(HW, hw_blk)
        x_index = lambda n, j: (n, 0, j)
        w_index = lambda n, j: (0, 0)

    # MXU dot is free filler for real StyleGAN sizes; fall back to the VPU reduce
    # for degenerate tiny blocks.
    use_mxu = (c_blk >= 8) and (D >= 8)

    kernel = functools.partial(_style_mod_kernel, wscale=float(wscale),
                               b_mul=float(b_mul), use_mxu=use_mxu)

    # Scoped-VMEM sizing: double-buffered x in + out blocks, (double-buffered)
    # resident weight/bias blocks and latent, plus headroom. Capped at 64 MiB so it
    # stays within v7x's physical VMEM.
    block_bytes = c_blk * hw_blk * itemsize
    w_bytes = c_blk * D * weight.dtype.itemsize
    vmem_needed = (4 * block_bytes + 4 * w_bytes
                   + 4 * c_blk * bias.dtype.itemsize
                   + 2 * N * D * latent.dtype.itemsize)
    vmem_limit = int(min(64 * 1024 * 1024, max(vmem_needed + (4 << 20), 16 << 20)))

    out3 = pl.pallas_call(
        kernel,
        out_shape=jax.ShapeDtypeStruct((N, C, HW), x.dtype),
        grid_spec=pltpu.PrefetchScalarGridSpec(
            num_scalar_prefetch=0,
            grid=(N, n_inner),
            in_specs=[
                pl.BlockSpec((N, D), lambda n, j: (0, 0)),          # latent (tiny, resident)
                pl.BlockSpec((c_blk, D), w_index),                  # W rows for ys
                pl.BlockSpec((c_blk, D), w_index),                  # W rows for yb
                pl.BlockSpec((c_blk, 1), w_index),                  # bias for ys
                pl.BlockSpec((c_blk, 1), w_index),                  # bias for yb
                pl.BlockSpec((None, c_blk, hw_blk), x_index),       # x slab
            ],
            out_specs=pl.BlockSpec((None, c_blk, hw_blk), x_index),
        ),
        compiler_params=pltpu.CompilerParams(
            dimension_semantics=("parallel", "parallel"),
            vmem_limit_bytes=vmem_limit,
        ),
    )(latent, w_ys, w_yb, b_ys, b_yb, x3)

    return out3.reshape(N, C, H, W)


def style_mod_ref(x, latent, weight, bias, *, wscale, b_mul):
    """Pure-JAX reference matching the PyTorch semantics."""
    style = latent @ (weight * wscale).T + bias * b_mul           # (N, 2C)
    N, C = x.shape[0], x.shape[1]
    style = style.reshape(N, 2, C, 1, 1)
    return x * (style[:, 0] + 1.0) + style[:, 1]


if __name__ == "__main__":
    key = jax.random.PRNGKey(0)
    k_x, k_lat, k_w, k_b, k_x2, k_lat2, k_w2, k_b2 = jax.random.split(key, 8)

    # --- Primary config: StyleMod(dlatent_dim=32, channels=4) on a 16x16 map. ---
    N, C, H, W = 2, 4, 16, 16
    D = 32                                       # dlatent_dim

    x = jax.random.normal(k_x, (N, C, H, W), dtype=jnp.float32)
    latent = jax.random.normal(k_lat, (N, D), dtype=jnp.float32)

    # EqualizedLinear(D, 2C, gain=1.0, use_wscale=True):
    #   he_std = 1.0 * D**-0.5; init_std = 1.0; wscale = he_std; b_mul = lrmul = 1.0
    wscale = 1.0 * D ** (-0.5)
    b_mul = 1.0
    weight = jax.random.normal(k_w, (2 * C, D), dtype=jnp.float32)     # * init_std (=1.0)
    bias = 0.1 * jax.random.normal(k_b, (2 * C,), dtype=jnp.float32)

    out = style_mod(x, latent, weight, bias, wscale=wscale, b_mul=b_mul)
    out = jax.block_until_ready(out)

    ref = style_mod_ref(x, latent, weight, bias, wscale=wscale, b_mul=b_mul)
    assert out.shape == x.shape, out.shape
    assert out.dtype == x.dtype
    assert jnp.allclose(out, ref, atol=1e-5, rtol=1e-5), \
        float(jnp.max(jnp.abs(out - ref)))

    # --- Secondary config: force the channel-blocked path (c_blk=8, 2 inner steps)
    # and the MXU style-dot via a tiny slab budget. ---
    N2, C2, H2, W2, D2 = 2, 16, 16, 16, 32
    x2 = jax.random.normal(k_x2, (N2, C2, H2, W2), dtype=jnp.float32)
    latent2 = jax.random.normal(k_lat2, (N2, D2), dtype=jnp.float32)
    wscale2 = 1.0 * D2 ** (-0.5)
    weight2 = jax.random.normal(k_w2, (2 * C2, D2), dtype=jnp.float32)
    bias2 = 0.1 * jax.random.normal(k_b2, (2 * C2,), dtype=jnp.float32)

    out2 = style_mod(x2, latent2, weight2, bias2, wscale=wscale2, b_mul=1.0,
                     target_block_bytes=8 * 1024)
    out2 = jax.block_until_ready(out2)
    ref2 = style_mod_ref(x2, latent2, weight2, bias2, wscale=wscale2, b_mul=1.0)
    assert out2.shape == x2.shape and out2.dtype == x2.dtype
    # Slightly looser tolerance: MXU multi-pass rounding may differ from the
    # XLA reference matmul.
    assert jnp.allclose(out2, ref2, atol=1e-4, rtol=1e-4), \
        float(jnp.max(jnp.abs(out2 - ref2)))

    print("KERNEL_OK")
</pallas_src>

<mosaic_0001>
module attributes {stable_mosaic.version = 11 : i64} {
  func.func @_style_mod_kernel(%arg0: i32, %arg1: i32, %arg2: memref<2x32xf32, #tpu.memory_space<vmem>>, %arg3: memref<4x32xf32, #tpu.memory_space<vmem>>, %arg4: memref<4x32xf32, #tpu.memory_space<vmem>>, %arg5: memref<4x1xf32, #tpu.memory_space<vmem>>, %arg6: memref<4x1xf32, #tpu.memory_space<vmem>>, %arg7: memref<1x4x256xf32, #tpu.memory_space<vmem>>, %arg8: memref<1x4x256xf32, #tpu.memory_space<vmem>>) attributes {dimension_semantics = [#tpu.dimension_semantics<parallel>, #tpu.dimension_semantics<parallel>], iteration_bounds = array<i64: 2, 1>, scalar_prefetch = 0 : i64, scratch_operands = 0 : i64, tpu.core_type = #tpu.core_type<tc>, window_params = [{pipeline_mode = #tpu.pipeline_mode<synchronous>, transform_indices = @transform_0, window_bounds = array<i64: 2, 32>}, {pipeline_mode = #tpu.pipeline_mode<synchronous>, transform_indices = @transform_1, window_bounds = array<i64: 4, 32>}, {pipeline_mode = #tpu.pipeline_mode<synchronous>, transform_indices = @transform_2, window_bounds = array<i64: 4, 32>}, {pipeline_mode = #tpu.pipeline_mode<synchronous>, transform_indices = @transform_3, window_bounds = array<i64: 4, 1>}, {pipeline_mode = #tpu.pipeline_mode<synchronous>, transform_indices = @transform_4, window_bounds = array<i64: 4, 1>}, {transform_indices = @transform_5, window_bounds = array<i64: 1, 4, 256>}, {transform_indices = @transform_6, window_bounds = array<i64: 1, 4, 256>}]} {
    %0 = arith.index_cast %arg0 : i32 to index
    %c0 = arith.constant 0 : index
    %1 = vector.load %arg2[%0, %c0] : memref<2x32xf32, #tpu.memory_space<vmem>>, vector<1x32xf32>
    %c0_0 = arith.constant 0 : index
    %c0_1 = arith.constant 0 : index
    %2 = vector.load %arg3[%c0_0, %c0_1] : memref<4x32xf32, #tpu.memory_space<vmem>>, vector<4x32xf32>
    %c0_2 = arith.constant 0 : index
    %c0_3 = arith.constant 0 : index
    %3 = vector.load %arg4[%c0_2, %c0_3] : memref<4x32xf32, #tpu.memory_space<vmem>>, vector<4x32xf32>
    %4 = vector.broadcast %1 : vector<1x32xf32> to vector<4x32xf32>
    %5 = arith.mulf %2, %4 : vector<4x32xf32>
    %cst = arith.constant dense<0.000000e+00> : vector<4xf32>
    %6 = vector.multi_reduction <add>, %5, %cst [1] : vector<4x32xf32> to vector<4xf32>
    %7 = vector.shape_cast %6 : vector<4xf32> to vector<4x1xf32>
    %8 = vector.broadcast %1 : vector<1x32xf32> to vector<4x32xf32>
    %9 = arith.mulf %3, %8 : vector<4x32xf32>
    %cst_4 = arith.constant dense<0.000000e+00> : vector<4xf32>
    %10 = vector.multi_reduction <add>, %9, %cst_4 [1] : vector<4x32xf32> to vector<4xf32>
    %11 = vector.shape_cast %10 : vector<4xf32> to vector<4x1xf32>
    %cst_5 = arith.constant 0.176776692 : f32
    %12 = vector.broadcast %cst_5 : f32 to vector<4x1xf32>
    %13 = arith.mulf %7, %12 : vector<4x1xf32>
    %c0_6 = arith.constant 0 : index
    %c0_7 = arith.constant 0 : index
    %14 = vector.load %arg5[%c0_6, %c0_7] : memref<4x1xf32, #tpu.memory_space<vmem>>, vector<4x1xf32>
    %cst_8 = arith.constant 1.000000e+00 : f32
    %15 = vector.broadcast %cst_8 : f32 to vector<4x1xf32>
    %16 = arith.mulf %14, %15 : vector<4x1xf32>
    %17 = arith.addf %13, %16 : vector<4x1xf32>
    %cst_9 = arith.constant 0.176776692 : f32
    %18 = vector.broadcast %cst_9 : f32 to vector<4x1xf32>
    %19 = arith.mulf %11, %18 : vector<4x1xf32>
    %c0_10 = arith.constant 0 : index
    %c0_11 = arith.constant 0 : index
    %20 = vector.load %arg6[%c0_10, %c0_11] : memref<4x1xf32, #tpu.memory_space<vmem>>, vector<4x1xf32>
    %cst_12 = arith.constant 1.000000e+00 : f32
    %21 = vector.broadcast %cst_12 : f32 to vector<4x1xf32>
    %22 = arith.mulf %20, %21 : vector<4x1xf32>
    %23 = arith.addf %19, %22 : vector<4x1xf32>
    %c0_13 = arith.constant 0 : index
    %c0_14 = arith.constant 0 : index
    %c0_15 = arith.constant 0 : index
    %24 = vector.load %arg7[%c0_13, %c0_14, %c0_15] : memref<1x4x256xf32, #tpu.memory_space<vmem>>, vector<1x4x256xf32>
    %25 = vector.shape_cast %24 : vector<1x4x256xf32> to vector<4x256xf32>
    %cst_16 = arith.constant 1.000000e+00 : f32
    %26 = vector.broadcast %cst_16 : f32 to vector<4x1xf32>
    %27 = arith.addf %17, %26 : vector<4x1xf32>
    %28 = vector.broadcast %27 : vector<4x1xf32> to vector<4x256xf32>
    %29 = arith.mulf %25, %28 : vector<4x256xf32>
    %30 = vector.broadcast %23 : vector<4x1xf32> to vector<4x256xf32>
    %31 = arith.addf %29, %30 : vector<4x256xf32>
    %c0_17 = arith.constant 0 : index
    %c0_18 = arith.constant 0 : index
    %c0_19 = arith.constant 0 : index
    %32 = vector.load %arg8[%c0_17, %c0_18, %c0_19] : memref<1x4x256xf32, #tpu.memory_space<vmem>>, vector<1x4x256xf32>
    %33 = vector.shape_cast %32 : vector<1x4x256xf32> to vector<4x256xf32>
    %34 = vector.shape_cast %31 : vector<4x256xf32> to vector<1x4x256xf32>
    tpu.vector_store %arg8[%c0_17, %c0_18, %c0_19], %34 {strides = array<i32>} : memref<1x4x256xf32, #tpu.memory_space<vmem>>, vector<1x4x256xf32>,
    return
  }
  func.func @transform_0(%arg0: i32, %arg1: i32) -> (i32, i32) {
    %c0_i32 = arith.constant 0 : i32
    %c0_i32_0 = arith.constant 0 : i32
    %c0_i32_1 = arith.constant 0 : i32
    return %c0_i32, %c0_i32_0 : i32, i32
  }
  func.func @transform_1(%arg0: i32, %arg1: i32) -> (i32, i32) {
    %c0_i32 = arith.constant 0 : i32
    %c0_i32_0 = arith.constant 0 : i32
    %c0_i32_1 = arith.constant 0 : i32
    return %c0_i32, %c0_i32_0 : i32, i32
  }
  func.func @transform_2(%arg0: i32, %arg1: i32) -> (i32, i32) {
    %c0_i32 = arith.constant 0 : i32
    %c0_i32_0 = arith.constant 0 : i32
    %c0_i32_1 = arith.constant 0 : i32
    return %c0_i32, %c0_i32_0 : i32, i32
  }
  func.func @transform_3(%arg0: i32, %arg1: i32) -> (i32, i32) {
    %c0_i32 = arith.constant 0 : i32
    %c0_i32_0 = arith.constant 0 : i32
    %c0_i32_1 = arith.constant 0 : i32
    return %c0_i32, %c0_i32_0 : i32, i32
  }
  func.func @transform_4(%arg0: i32, %arg1: i32) -> (i32, i32) {
    %c0_i32 = arith.constant 0 : i32
    %c0_i32_0 = arith.constant 0 : i32
    %c0_i32_1 = arith.constant 0 : i32
    return %c0_i32, %c0_i32_0 : i32, i32
  }
  func.func @transform_5(%arg0: i32, %arg1: i32) -> (i32, i32, i32) {
    %c0_i32 = arith.constant 0 : i32
    %c0_i32_0 = arith.constant 0 : i32
    return %arg0, %c0_i32, %arg1 : i32, i32, i32
  }
  func.func @transform_6(%arg0: i32, %arg1: i32) -> (i32, i32, i32) {
    %c0_i32 = arith.constant 0 : i32
    %c0_i32_0 = arith.constant 0 : i32
    return %arg0, %c0_i32, %arg1 : i32, i32, i32
  }
}

</mosaic_0001>

<llo_original>
// kernel: tpu_custom_call.1
$region0: #{tpu_custom_call.1}
  #allocation0 [shape = 'u32[]', space=smem, size = 0x4, offset = 0x4, fixed_abs, tag = 'smem constant byte address 0x4 - core index']
  #allocation1 [shape = 'u32[72,128]{1,0:T(1,128)}', space=vmem, size = 0x9000, scoped, tag = 'internal scratch']
  %s0 = inlined_call_operand.hbm [shape: f32[2,32], index: 0, kind: input, shape index: {}]
  %s1 = inlined_call_operand.vmem [shape: f32[4,32], index: 1, kind: input, shape index: {}]
  %s2 = inlined_call_operand.vmem [shape: f32[4,32], index: 2, kind: input, shape index: {}]
  %s3 = inlined_call_operand.vmem [shape: f32[4,1], index: 3, kind: input, shape index: {}]
  %s4 = inlined_call_operand.vmem [shape: f32[4,1], index: 4, kind: input, shape index: {}]
  %s5 = inlined_call_operand.hbm [shape: f32[2,4,256], index: 5, kind: input, shape index: {}]
  %s6 = inlined_call_operand.hbm [shape: f32[2,4,256], index: 6, kind: output, shape index: {}]
  %s7 = sld [smem:[#allocation0]]
  $region65: #{tpu_custom_call.1} parent=0
    _
  %s9 = ssub.s32 1, %s7
  %s10 = scalar_select 0, %s9, %s7
  $region1: #{tpu_custom_call.1} parent=0
    #allocation2 [shape = 'u8[1024]{0}', space=vmem, size = 0x400, scoped, tag = 'input window, operand 0, single buffered']
    #allocation3 [shape = 's32[2]{0}', space=sflag, size = 0x8, scoped, tag = 'scoped memory for tpu_custom_call.1']
    #allocation4 [shape = 's32[2]{0}', space=sflag, size = 0x8, scoped, tag = 'scoped memory for tpu_custom_call.1']
    #allocation5 [shape = 'u8[8192]{0}', space=vmem, size = 0x2000, scoped, tag = 'input window, operand 5']
    #allocation6 [shape = 's32[2]{0}', space=sflag, size = 0x8, scoped, tag = 'scoped memory for tpu_custom_call.1']
    #allocation7 [shape = 'u8[8192]{0}', space=vmem, size = 0x2000, scoped, tag = 'output window, operand 0']
    %11 = vsyncpa [#allocation3], 0
    %12 = vsyncpa [#allocation6], 0
    %s13 = scalar_lea.sflag [#allocation6], 1
    %14 = vsyncpa %s13, 0
    %15 = vsyncpa [#allocation4], 0
    %s16 = scalar_lea.sflag [#allocation4], 1
    %17 = vsyncpa %s16, 0
    loop: start=0, step=1, limit=4
    $region2: #{tpu_custom_call.1} parent=1 // loop_pre_header
      _
    $region3: #{tpu_custom_call.1} parent=1 // loop_header
      %s19 = sphi 0, %s23
      %p20 = scmp.ge.s32.totalorder %s19, 4
      %s26 = sphi 0, %s38
      %s27 = sphi 0, %s34
      %s28 = sphi 0, %s26
      %s29 = sphi 0, %s27
      %s30 = sphi 0, %s28
      %s31 = sphi 0, %s29
      %s39 = sphi 0, %s39
      %s41 = sphi 0, %s39
      %s42 = sphi 0, %s41
      %s56 = sphi 0, %s42
      %s60 = sphi 0, %s60
      %s62 = sphi 0, %s60
      %s63 = sphi 0, %s62
      %s77 = sphi 0, %s63
      %s81 = sphi 0, %s81
      %s83 = sphi 0, %s81
      %s84 = sphi 0, %s83
      %s98 = sphi 0, %s84
      %s102 = sphi 0, %s102
      %s104 = sphi 0, %s102
      %s105 = sphi 0, %s104
      %s119 = sphi 0, %s105
      %s123 = sphi 0, %s123
      %s125 = sphi 0, %s123
      %s126 = sphi 0, %s125
      %s140 = sphi 0, %s126
      %s148 = sphi 0, %s150
      %s151 = sphi 0, %s148
      %s152 = sphi 0, %s151
      %s168 = sphi 0, %s152
      %s176 = sphi 0, %s178
      %s179 = sphi 0, %s176
      %s180 = sphi 0, %s179
      %s196 = sphi 0, %s180
    $region4: #{tpu_custom_call.1} parent=1 // loop_header_branch
      %22 = sbr.rel (%p20) target = $region8
    $region5: #{tpu_custom_call.1} parent=1 // loop_body
      %s24 = ssub.s32 %s19, 1
      %s25 = ssub.s32 %s19, 2
      %s32 = sadd.s32 1, %s27
      %p33 = scmp.ge.s32.totalorder %s32, 1
      %s34 = scalar_select %p33, 0, %s32
      %s35 = sadd.s32 1, %s26
      %s36 = scalar_select %p33, %s35, %s26
      %p37 = scmp.ge.s32.totalorder %s36, 2
      %s38 = scalar_select %p37, 0, %s36
      %s40 = sadd.s32 %s39, 1
      %p43 = scmp.eq.s32.totalorder %s19, 1
      %p44 = scmp.ne.s32.totalorder %s39, %s41
      %p45 = scmp.eq.s32.totalorder %s19, 0
      %p46 = por %p44, %p45
      %p47 = scmp.ne.s32.totalorder %s39, %s41
      %p48 = scmp.eq.s32.totalorder %s24, 1
      %p49 = por %p47, %p48
      %p50 = scmp.ne.s32.totalorder %s41, %s42
      %p51 = scmp.eq.s32.totalorder %s24, 0
      %p52 = por %p50, %p51
      %p53 = scmp.ne.s32.totalorder %s41, %s42
      %p54 = scmp.eq.s32.totalorder %s25, 1
      %p55 = por %p53, %p54
      %p57 = scmp.ne.s32.totalorder %s42, %s56
      %p58 = scmp.eq.s32.totalorder %s25, 0
      %p59 = por %p57, %p58
      %s61 = sadd.s32 %s60, 1
      %p64 = scmp.eq.s32.totalorder %s19, 1
      %p65 = scmp.ne.s32.totalorder %s60, %s62
      %p66 = scmp.eq.s32.totalorder %s19, 0
      %p67 = por %p65, %p66
      %p68 = scmp.ne.s32.totalorder %s60, %s62
      %p69 = scmp.eq.s32.totalorder %s24, 1
      %p70 = por %p68, %p69
      %p71 = scmp.ne.s32.totalorder %s62, %s63
      %p72 = scmp.eq.s32.totalorder %s24, 0
      %p73 = por %p71, %p72
      %p74 = scmp.ne.s32.totalorder %s62, %s63
      %p75 = scmp.eq.s32.totalorder %s25, 1
      %p76 = por %p74, %p75
      %p78 = scmp.ne.s32.totalorder %s63, %s77
      %p79 = scmp.eq.s32.totalorder %s25, 0
      %p80 = por %p78, %p79
      %s82 = sadd.s32 %s81, 1
      %p85 = scmp.eq.s32.totalorder %s19, 1
      %p86 = scmp.ne.s32.totalorder %s81, %s83
      %p87 = scmp.eq.s32.totalorder %s19, 0
      %p88 = por %p86, %p87
      %p89 = scmp.ne.s32.totalorder %s81, %s83
      %p90 = scmp.eq.s32.totalorder %s24, 1
      %p91 = por %p89, %p90
      %p92 = scmp.ne.s32.totalorder %s83, %s84
      %p93 = scmp.eq.s32.totalorder %s24, 0
      %p94 = por %p92, %p93
      %p95 = scmp.ne.s32.totalorder %s83, %s84
      %p96 = scmp.eq.s32.totalorder %s25, 1
      %p97 = por %p95, %p96
      %p99 = scmp.ne.s32.totalorder %s84, %s98
      %p100 = scmp.eq.s32.totalorder %s25, 0
      %p101 = por %p99, %p100
      %s103 = sadd.s32 %s102, 1
      %p106 = scmp.eq.s32.totalorder %s19, 1
      %p107 = scmp.ne.s32.totalorder %s102, %s104
      %p108 = scmp.eq.s32.totalorder %s19, 0
      %p109 = por %p107, %p108
      %p110 = scmp.ne.s32.totalorder %s102, %s104
      %p111 = scmp.eq.s32.totalorder %s24, 1
      %p112 = por %p110, %p111
      %p113 = scmp.ne.s32.totalorder %s104, %s105
      %p114 = scmp.eq.s32.totalorder %s24, 0
      %p115 = por %p113, %p114
      %p116 = scmp.ne.s32.totalorder %s104, %s105
      %p117 = scmp.eq.s32.totalorder %s25, 1
      %p118 = por %p116, %p117
      %p120 = scmp.ne.s32.totalorder %s105, %s119
      %p121 = scmp.eq.s32.totalorder %s25, 0
      %p122 = por %p120, %p121
      %s124 = sadd.s32 %s123, 1
      %p127 = scmp.eq.s32.totalorder %s19, 1
      %p128 = scmp.ne.s32.totalorder %s123, %s125
      %p129 = scmp.eq.s32.totalorder %s19, 0
      %p130 = por %p128, %p129
      %p131 = scmp.ne.s32.totalorder %s123, %s125
      %p132 = scmp.eq.s32.totalorder %s24, 1
      %p133 = por %p131, %p132
      %p134 = scmp.ne.s32.totalorder %s125, %s126
      %p135 = scmp.eq.s32.totalorder %s24, 0
      %p136 = por %p134, %p135
      %p137 = scmp.ne.s32.totalorder %s125, %s126
      %p138 = scmp.eq.s32.totalorder %s25, 1
      %p139 = por %p137, %p138
      %p141 = scmp.ne.s32.totalorder %s126, %s140
      %p142 = scmp.eq.s32.totalorder %s25, 0
      %p143 = por %p141, %p142
      %s144 = ssub.s32 %s26, %s38
      %s145 = ssub.s32 %s27, %s34
      %s146 = sor.u32 %s144, %s145
      %p147 = scmp.eq.s32.totalorder %s146, 0
      %s149 = sadd.s32 %s148, 1
      %s150 = scalar_select %p147, %s148, %s149
      %p153 = pneg %p147
      %p154 = scmp.eq.s32.totalorder %s19, 1
      %p155 = por %p153, %p154
      %p156 = scmp.ne.s32.totalorder %s148, %s151
      %p157 = scmp.eq.s32.totalorder %s19, 0
      %p158 = por %p156, %p157
      %p159 = scmp.ne.s32.totalorder %s148, %s151
      %p160 = scmp.eq.s32.totalorder %s24, 1
      %p161 = por %p159, %p160
      %p162 = scmp.ne.s32.totalorder %s151, %s152
      %p163 = scmp.eq.s32.totalorder %s24, 0
      %p164 = por %p162, %p163
      %p165 = scmp.ne.s32.totalorder %s151, %s152
      %p166 = scmp.eq.s32.totalorder %s25, 1
      %p167 = por %p165, %p166
      %p169 = scmp.ne.s32.totalorder %s152, %s168
      %p170 = scmp.eq.s32.totalorder %s25, 0
      %p171 = por %p169, %p170
      %s172 = ssub.s32 %s26, %s38
      %s173 = ssub.s32 %s27, %s34
      %s174 = sor.u32 %s172, %s173
      %p175 = scmp.eq.s32.totalorder %s174, 0
      %s177 = sadd.s32 %s176, 1
      %s178 = scalar_select %p175, %s176, %s177
      %p181 = pneg %p175
      %p182 = scmp.eq.s32.totalorder %s19, 1
      %p183 = por %p181, %p182
      %p184 = scmp.ne.s32.totalorder %s176, %s179
      %p185 = scmp.eq.s32.totalorder %s19, 0
      %p186 = por %p184, %p185
      %p187 = scmp.ne.s32.totalorder %s176, %s179
      %p188 = scmp.eq.s32.totalorder %s24, 1
      %p189 = por %p187, %p188
      %p190 = scmp.ne.s32.totalorder %s179, %s180
      %p191 = scmp.eq.s32.totalorder %s24, 0
      %p192 = por %p190, %p191
      %p193 = scmp.ne.s32.totalorder %s179, %s180
      %p194 = scmp.eq.s32.totalorder %s25, 1
      %p195 = por %p193, %p194
      %p197 = scmp.ne.s32.totalorder %s180, %s196
      %p198 = scmp.eq.s32.totalorder %s25, 0
      %p199 = por %p197, %p198
      %p200 = scmp.le.s32.totalorder 1, %s19
      %p201 = scmp.lt.s32.totalorder %s19, 3
      %p202 = pnand %p200, %p201
      %p203 = pneg %p202
      // Predicated region
      $region9: #{tpu_custom_call.1} parent=5 // pred_check
        _
      $region10: #{tpu_custom_call.1} parent=5 // pred_check_branch
        %205 = sbr.rel (%p202) target = $region12
      $region11: #{tpu_custom_call.1} parent=5 // pred_region
        %s206 = ssub.s32 %s19, 1
        // Predicated region
        $region13: #{tpu_custom_call.1} parent=11 // pred_check
          %p207 = pneg %p52
        $region14: #{tpu_custom_call.1} parent=11 // pred_check_branch
          %209 = sbr.rel (%p207) target = $region16
        $region15: #{tpu_custom_call.1} parent=11 // pred_region
          %211 = vsyncadd [#allocation3], 0
          %s213 = sshll.u32 %s0, 4
          %s214 = int_to_ptr.hbm [resolvable:$true] %s213
          %s215 = sshll.u32 [#allocation2], 4
          %s216 = int_to_ptr.vmem [resolvable:$true] %s215
          %218 = dma.hbm_to_vmem [thread:$0]  %s214, 32, %s216, [#allocation3]
        $region16: #{tpu_custom_call.1} parent=11 // pred_fallthru
          _
        // Predicated region
        $region17: #{tpu_custom_call.1} parent=11 // pred_check
          %p219 = pneg %p73
        $region18: #{tpu_custom_call.1} parent=11 // pred_check_branch
          %221 = sbr.rel (%p219) target = $region20
        $region19: #{tpu_custom_call.1} parent=11 // pred_region
          _
        $region20: #{tpu_custom_call.1} parent=11 // pred_fallthru
          _
        // Predicated region
        $region21: #{tpu_custom_call.1} parent=11 // pred_check
          %p222 = pneg %p94
        $region22: #{tpu_custom_call.1} parent=11 // pred_check_branch
          %224 = sbr.rel (%p222) target = $region24
        $region23: #{tpu_custom_call.1} parent=11 // pred_region
          _
        $region24: #{tpu_custom_call.1} parent=11 // pred_fallthru
          _
        // Predicated region
        $region25: #{tpu_custom_call.1} parent=11 // pred_check
          %p225 = pneg %p115
        $region26: #{tpu_custom_call.1} parent=11 // pred_check_branch
          %227 = sbr.rel (%p225) target = $region28
        $region27: #{tpu_custom_call.1} parent=11 // pred_region
          _
        $region28: #{tpu_custom_call.1} parent=11 // pred_fallthru
          _
        // Predicated region
        $region29: #{tpu_custom_call.1} parent=11 // pred_check
          %p228 = pneg %p136
        $region30: #{tpu_custom_call.1} parent=11 // pred_check_branch
          %230 = sbr.rel (%p228) target = $region32
        $region31: #{tpu_custom_call.1} parent=11 // pred_region
          _
        $region32: #{tpu_custom_call.1} parent=11 // pred_fallthru
          _
      $region12: #{tpu_custom_call.1} parent=5 // pred_fallthru
        _
      %p231 = scmp.lt.s32.totalorder %s19, 2
      // Predicated region
      $region33: #{tpu_custom_call.1} parent=5 // pred_check
        %p232 = pneg %p231
      $region34: #{tpu_custom_call.1} parent=5 // pred_check_branch
        %234 = sbr.rel (%p232) target = $region36
      $region35: #{tpu_custom_call.1} parent=5 // pred_region
        // Predicated region
        $region37: #{tpu_custom_call.1} parent=35 // pred_check
          %p235 = pneg %p158
        $region38: #{tpu_custom_call.1} parent=35 // pred_check_branch
          %237 = sbr.rel (%p235) target = $region40
        $region39: #{tpu_custom_call.1} parent=35 // pred_region
          %s238 = sand.u32 %s148, 1
          %s239 = scalar_lea.sflag [#allocation6], %s238
          %s240 = sand.u32 %s148, 1
          %s241 = smul.addr %s240, 8
          %s242 = scalar_lea.vmem [#allocation5], %s241
          %s243 = smul.u32 2, %s27
          %245 = vsyncadd %s239, 0
          %s246 = smul.addr %s26, 2
          %s247 = sadd.s32 %s243, %s246
          %s248 = smul.addr %s247, 4
          %s249 = scalar_lea.hbm %s5, %s248
          %s251 = sshll.u32 %s249, 4
          %s252 = int_to_ptr.hbm [resolvable:$true] %s251
          %s253 = sshll.u32 %s242, 4
          %s254 = int_to_ptr.vmem [resolvable:$true] %s253
          %256 = dma.hbm_to_vmem [thread:$0]  %s252, 128, %s254, %s239
        $region40: #{tpu_custom_call.1} parent=35 // pred_fallthru
          _
      $region36: #{tpu_custom_call.1} parent=5 // pred_fallthru
        _
      %p257 = scmp.le.s32.totalorder 1, %s19
      %p258 = scmp.lt.s32.totalorder %s19, 3
      %p259 = pnand %p257, %p258
      %p260 = pneg %p259
      // Predicated region
      $region41: #{tpu_custom_call.1} parent=5 // pred_check
        _
      $region42: #{tpu_custom_call.1} parent=5 // pred_check_branch
        %262 = sbr.rel (%p259) target = $region44
      $region43: #{tpu_custom_call.1} parent=5 // pred_region
        %s263 = ssub.s32 %s19, 1
        // Predicated region
        $region45: #{tpu_custom_call.1} parent=43 // pred_check
          %p264 = pneg %p52
        $region46: #{tpu_custom_call.1} parent=43 // pred_check_branch
          %266 = sbr.rel (%p264) target = $region48
        $region47: #{tpu_custom_call.1} parent=43 // pred_region
          %268 = dma.done [#allocation3], 32
        $region48: #{tpu_custom_call.1} parent=43 // pred_fallthru
          _
        %s269 = sand.u32 %s151, 1
        %s270 = scalar_lea.sflag [#allocation6], %s269
        %s271 = sand.u32 %s151, 1
        %s272 = smul.addr %s271, 8
        %s273 = scalar_lea.vmem [#allocation5], %s272
        // Predicated region
        $region49: #{tpu_custom_call.1} parent=43 // pred_check
          %p274 = pneg %p164
        $region50: #{tpu_custom_call.1} parent=43 // pred_check_branch
          %276 = sbr.rel (%p274) target = $region52
        $region51: #{tpu_custom_call.1} parent=43 // pred_region
          %278 = dma.done %s270, 128
        $region52: #{tpu_custom_call.1} parent=43 // pred_fallthru
          _
        %p279 = pneg %p52
        %p280 = pneg %p49
        %p281 = pneg %p73
        %p282 = pneg %p70
        %p283 = pneg %p94
        %p284 = pneg %p91
        %p285 = pneg %p115
        %p286 = pneg %p112
        %p287 = pneg %p136
        %p288 = pneg %p133
        %s289 = sand.u32 %s151, 1
        %s290 = scalar_lea.sflag [#allocation6], %s289
        %s291 = sand.u32 %s151, 1
        %s292 = smul.addr %s291, 8
        %s293 = scalar_lea.vmem [#allocation5], %s292
        %p294 = pneg %p164
        %p295 = pneg %p161
        %p296 = pneg %p192
        %p297 = pneg %p189
        %s298 = sand.u32 %s179, 1
        %s299 = scalar_lea.sflag [#allocation4], %s298
        %s300 = sand.u32 %s179, 1
        %s301 = smul.addr %s300, 8
        %s302 = scalar_lea.vmem [#allocation7], %s301
        %s303 = smul.u32 2, %s29
        %s304 = smul.u32 2, %s29
        %s305 = scalar_lea.vmem [#allocation2], %s28
        %v306 = vld [vmem:[%s305] sm:$0x1]
        %v307 = vld [vmem:[%s1] sm:$0xf]
        %v308 = vld [vmem:[%s2] sm:$0xf]
        %v309 = vperm.slane %v306, 0
        %v310 = vmul.f32 %v307, %v309
        %vm311 = vcmask 257024
        %v312 = vsel %vm311, %v310, 0.0
        %313 = vadd.xlane.f32.xlu0 %v312
        %v314 = vpop.xlane.xlu0 %313
        %v315 = vmul.f32 %v308, %v309
        %v316 = vsel %vm311, %v315, 0.0
        %317 = vadd.xlane.f32.xlu0 %v316
        %v318 = vpop.xlane.xlu0 %317
        %v319 = vmul.f32 %v314, 0.17677669
        %v320 = vld [vmem:[%s3] sm:$0xf]
        %v321 = vadd.f32 %v319, %v320
        %v322 = vmul.f32 %v318, 0.17677669
        %v323 = vld [vmem:[%s4] sm:$0xf]
        %v324 = vadd.f32 %v322, %v323
        %v325 = vld [vmem:[%s273] sm:$0xff]
        %v326 = vadd.f32 %v321, 1.0
        %328 = vset.pattern.permute.xlu0 0
        %329 = vperm.xlu0 %328, %v326
        %v330 = vpop.permute.xlu0 %329
        %v332 = vunpack.c.l.s4 839922192
        %v333 = vunpack.c.0.s8 %v332
        %v334 = vperm.slane %v330, %v333
        %v336 = vmul.f32 %v325, %v334
        %338 = vset.pattern.permute.xlu0 0
        %339 = vperm.xlu0 %338, %v324
        %v340 = vpop.permute.xlu0 %339
        %v342 = vunpack.c.l.s4 839922192
        %v343 = vunpack.c.0.s8 %v342
        %v344 = vperm.slane %v340, %v343
        %v346 = vadd.f32 %v336, %v344
        %347 = vst [vmem:[%s302] sm:$0xff] %v346
        %s348 = sand.u32 %s179, 1
        %s349 = scalar_lea.sflag [#allocation4], %s348
        %s350 = sand.u32 %s179, 1
        %s351 = smul.addr %s350, 8
        %s352 = scalar_lea.vmem [#allocation7], %s351
        // Predicated region
        $region53: #{tpu_custom_call.1} parent=43 // pred_check
          %p353 = pneg %p189
        $region54: #{tpu_custom_call.1} parent=43 // pred_check_branch
          %355 = sbr.rel (%p353) target = $region56
        $region55: #{tpu_custom_call.1} parent=43 // pred_region
          %s356 = smul.u32 2, %s29
          %358 = vsyncadd %s349, 0
          %s359 = smul.addr %s28, 2
          %s360 = sadd.s32 %s356, %s359
          %s361 = smul.addr %s360, 4
          %s362 = scalar_lea.hbm %s6, %s361
          %s364 = sshll.u32 %s352, 4
          %s365 = int_to_ptr.vmem [resolvable:$true] %s364
          %s366 = sshll.u32 %s362, 4
          %s367 = int_to_ptr.hbm [resolvable:$true] %s366
          %369 = dma.vmem_to_hbm [thread:$0]  %s365, 128, %s367, %s349
        $region56: #{tpu_custom_call.1} parent=43 // pred_fallthru
          _
      $region44: #{tpu_custom_call.1} parent=5 // pred_fallthru
        _
      %p370 = scmp.le.s32.totalorder 2, %s19
      // Predicated region
      $region57: #{tpu_custom_call.1} parent=5 // pred_check
        %p371 = pneg %p370
      $region58: #{tpu_custom_call.1} parent=5 // pred_check_branch
        %373 = sbr.rel (%p371) target = $region60
      $region59: #{tpu_custom_call.1} parent=5 // pred_region
        %s374 = ssub.s32 %s19, 2
        // Predicated region
        $region61: #{tpu_custom_call.1} parent=59 // pred_check
          %p375 = pneg %p195
        $region62: #{tpu_custom_call.1} parent=59 // pred_check_branch
          %377 = sbr.rel (%p375) target = $region64
        $region63: #{tpu_custom_call.1} parent=59 // pred_region
          %s378 = sand.u32 %s180, 1
          %s379 = scalar_lea.sflag [#allocation4], %s378
          %s380 = sand.u32 %s180, 1
          %s381 = smul.addr %s380, 8
          %s382 = scalar_lea.vmem [#allocation7], %s381
          %384 = dma.done %s379, 128
        $region64: #{tpu_custom_call.1} parent=59 // pred_fallthru
          _
      $region60: #{tpu_custom_call.1} parent=5 // pred_fallthru
        _
    $region6: #{tpu_custom_call.1} parent=1 // loop_footer
      %s23 = sadd.s32 1, %s19
    $region7: #{tpu_custom_call.1} parent=1 // loop_footer_branch
      %18 = sbr.rel target = $region3
    $region8: #{tpu_custom_call.1} parent=1 // loop_exit
      _
    %385 = vsyncpa [#allocation3], 1
    %s386 = scalar_lea.sflag [#allocation3], 1
    %387 = vsyncpa %s386, 1
    %388 = vsyncpa [#allocation6], 1
    %s389 = scalar_lea.sflag [#allocation6], 1
    %390 = vsyncpa %s389, 1
    %391 = vsyncpa [#allocation4], 1
    %s392 = scalar_lea.sflag [#allocation4], 1
    %393 = vsyncpa %s392, 1

</llo_original>
